<compile_context>
chip_gen: v7x
topology: tpu7x:2x2x1
jax: 0.10.0
libtpu: 0.0.40
codegen_flags: <defaults>
</compile_context>

<pallas_src>
import functools

import jax
import jax.numpy as jnp
from jax import lax
from jax.experimental import pallas as pl
from jax.experimental.pallas import tpu as pltpu

LANES = 128
SUBLANES = 8
_ROW_TILE_TARGET = 2048   # 2048 x 128 f32 = 1 MiB per input per grid step
_MAX_CHUNKS = 2           # leading "parallel" axis -> 2 TensorCores on v7x

RELATIVISTIC = ("ragan", "rahinge", "ralsgan")
METRICS = ("nsgan", "wgan", "lsgan", "hinge") + RELATIVISTIC


def _softplus(x):
    # numerically stable softplus, matches F.softplus
    return jnp.maximum(x, 0.0) + jnp.log1p(jnp.exp(-jnp.abs(x)))


def _terms(metric: str, mode: str, smoothing: float):
    """Return (term_real_fn_or_None, term_fake_fn).

    For relativistic metrics the functions are applied to d_rf / d_fr
    (average_diff outputs); otherwise to pred_real / pred_fake directly.
    """
    if mode == "D":
        table = {
            "nsgan":   (lambda r: _softplus(-r),               lambda f: _softplus(f)),
            "wgan":    (lambda r: -r,                          lambda f: f),
            "lsgan":   (lambda r: (r - 1.0 * smoothing) ** 2,  lambda f: f * f),
            "hinge":   (lambda r: jnp.maximum(1.0 - r, 0.0),   lambda f: jnp.maximum(1.0 + f, 0.0)),
            "ragan":   (lambda d: _softplus(-d),               lambda d: _softplus(d)),
            "rahinge": (lambda d: jnp.maximum(1.0 - d, 0.0),   lambda d: jnp.maximum(1.0 + d, 0.0)),
            "ralsgan": (lambda d: (d - 1.0) ** 2,              lambda d: (d + 1.0) ** 2),
        }
    elif mode == "G":
        table = {
            "nsgan":   (None,                                  lambda f: _softplus(-f)),
            "wgan":    (None,                                  lambda f: -f),
            "lsgan":   (None,                                  lambda f: (f - 1.0) ** 2),
            "hinge":   (None,                                  lambda f: -f),
            "ragan":   (lambda d: _softplus(d),                lambda d: _softplus(-d)),
            "rahinge": (lambda d: jnp.maximum(1.0 + d, 0.0),   lambda d: jnp.maximum(1.0 - d, 0.0)),
            "ralsgan": (lambda d: (d + 1.0) ** 2,              lambda d: (d - 1.0) ** 2),
        }
    else:
        raise ValueError(f"mode must be 'G' or 'D', got {mode!r}")
    if metric not in table:
        raise NotImplementedError(metric)
    return table[metric]


def _fold_to_vreg(x, tile_rows):
    """(..., tile_rows, 128) -> (8, 128) partial sums with pure VPU adds.

    The sublane-group reshape (tile_rows,128)->(tile_rows//8,8,128) is
    layout-free; the final cross-lane/sublane reduce to a scalar is done once,
    outside the kernel.
    """
    lead = x.shape[:-2]
    x = x.reshape(lead + (tile_rows // SUBLANES, SUBLANES, LANES))
    return x.sum(axis=tuple(range(x.ndim - 2)))


# --------------------------- non-relativistic kernel ---------------------------
def _make_flat_kernel(metric, mode, smoothing, *, n_real, n_fake, n_padded,
                      tile_rows, tiles_per_chunk, use_real):
    term_r, term_f = _terms(metric, mode, smoothing)

    def kernel(*refs):
        refs = list(refs)
        o_ref = refs.pop()
        fake_ref = refs.pop()
        real_ref = refs.pop() if use_real else None

        c = pl.program_id(0)
        t = pl.program_id(1)

        @pl.when(t == 0)
        def _init():
            o_ref[...] = jnp.zeros_like(o_ref)

        base = (c * tiles_per_chunk + t) * (tile_rows * LANES)

        def reduce_term(ref, fn, n):
            v = fn(ref[...].astype(jnp.float32))
            if n_padded != n:  # static: mask the zero-padded tail (int32 indices)
                ridx = lax.broadcasted_iota(jnp.int32, (tile_rows, LANES), 0)
                lidx = lax.broadcasted_iota(jnp.int32, (tile_rows, LANES), 1)
                v = jnp.where(base + ridx * LANES + lidx < n, v, 0.0)
            return _fold_to_vreg(v, tile_rows) * (1.0 / n)

        contrib = reduce_term(fake_ref, term_f, n_fake)
        if use_real:
            contrib = contrib + reduce_term(real_ref, term_r, n_real)
        o_ref[...] += contrib[None]

    return kernel


# ----------------------------- relativistic kernel -----------------------------
def _make_rel_kernel(metric, mode, smoothing, *, batch, n_feat, feat_padded,
                     tile_rows, tiles_per_chunk):
    term_r, term_f = _terms(metric, mode, smoothing)
    n_total = batch * n_feat  # .mean() denominator of each term

    def kernel(real_ref, fake_ref, o_ref):
        c = pl.program_id(0)
        t = pl.program_id(1)

        @pl.when(t == 0)
        def _init():
            o_ref[...] = jnp.zeros_like(o_ref)

        pr = real_ref[...].astype(jnp.float32)   # (B, tile_rows, 128)
        pf = fake_ref[...].astype(jnp.float32)
        # average_diff(t1, t2) = t1 - t2.mean(0, keepdim=True); the batch mean
        # is per feature column, so tiling along features is exact.
        d_rf = pr - jnp.mean(pf, axis=0, keepdims=True)
        d_fr = pf - jnp.mean(pr, axis=0, keepdims=True)

        vr = term_r(d_rf)
        vf = term_f(d_fr)
        if feat_padded != n_feat:  # static: mask the zero-padded feature tail
            base = (c * tiles_per_chunk + t) * (tile_rows * LANES)
            ridx = lax.broadcasted_iota(jnp.int32, (1, tile_rows, LANES), 1)
            lidx = lax.broadcasted_iota(jnp.int32, (1, tile_rows, LANES), 2)
            valid = base + ridx * LANES + lidx < n_feat
            vr = jnp.where(valid, vr, 0.0)
            vf = jnp.where(valid, vf, 0.0)

        contrib = (_fold_to_vreg(vr, tile_rows) + _fold_to_vreg(vf, tile_rows)) * (1.0 / n_total)
        o_ref[...] += contrib[None]

    return kernel


# --------------------------------- wrapper ---------------------------------
def _round_up(x, m):
    return -(-x // m) * m


def _sublane_multiple(dtype):
    return {4: 8, 2: 16, 1: 32}.get(jnp.dtype(dtype).itemsize, 8)


def _plan(rows_needed, row_align, row_target):
    """-> (tile_rows, chunks, tiles_per_chunk)."""
    rows = max(_round_up(max(rows_needed, 1), row_align), row_align)
    if rows <= row_target:
        return rows, 1, 1
    tile_rows = row_target
    tiles = -(-rows // tile_rows)
    chunks = _MAX_CHUNKS if tiles >= _MAX_CHUNKS else 1
    tiles_per_chunk = -(-tiles // chunks)
    return tile_rows, chunks, tiles_per_chunk


def _pack_rows(x, rows_total):
    flat = x.reshape(-1)
    pad = rows_total * LANES - flat.shape[0]
    if pad:
        flat = jnp.pad(flat, (0, pad))
    return flat.reshape(rows_total, LANES)


def _pack_rel(x, rows_total):
    b = x.shape[0]
    flat = x.reshape(b, -1)
    pad = rows_total * LANES - flat.shape[1]
    if pad:
        flat = jnp.pad(flat, ((0, 0), (0, pad)))
    return flat.reshape(b, rows_total, LANES)


@functools.partial(jax.jit, static_argnames=("mode", "metric", "smoothing"))
def gan_loss(pred_real, pred_fake, *, mode: str, metric: str, smoothing: float = 1.0):
    if mode not in ("G", "D"):
        raise ValueError(f"mode must be 'G' or 'D', got {mode!r}")
    if metric not in METRICS:
        raise NotImplementedError(metric)
    smoothing = float(smoothing)

    if metric in RELATIVISTIC:
        if pred_real.shape != pred_fake.shape:
            raise ValueError("relativistic metrics require matching shapes")
        b = pred_real.shape[0]
        n_feat = int(pred_real.size) // b
        align = _sublane_multiple(pred_real.dtype)
        row_target = max(align, _round_up(max(_ROW_TILE_TARGET // b, 1), align))
        tile_rows, chunks, tpc = _plan(-(-n_feat // LANES), align, row_target)
        rows_total = tile_rows * chunks * tpc
        feat_padded = rows_total * LANES

        operands = (_pack_rel(pred_real, rows_total), _pack_rel(pred_fake, rows_total))
        block = (b, tile_rows, LANES)
        idx = lambda c, t, _tpc=tpc: (0, c * _tpc + t, 0)
        in_specs = [pl.BlockSpec(block, idx), pl.BlockSpec(block, idx)]
        kernel = _make_rel_kernel(metric, mode, smoothing, batch=b, n_feat=n_feat,
                                  feat_padded=feat_padded, tile_rows=tile_rows,
                                  tiles_per_chunk=tpc)
        tile_bytes = 2 * b * tile_rows * LANES * jnp.dtype(pred_real.dtype).itemsize
    else:
        use_real = (mode == "D")   # G-mode never reads pred_real -> skip its DMA
        n_real = int(pred_real.size)
        n_fake = int(pred_fake.size)
        align = _sublane_multiple(pred_fake.dtype)
        rows_needed = -(-max(n_real if use_real else 0, n_fake) // LANES)
        tile_rows, chunks, tpc = _plan(rows_needed, align, _ROW_TILE_TARGET)
        rows_total = tile_rows * chunks * tpc
        n_padded = rows_total * LANES

        operands = []
        in_specs = []
        idx = lambda c, t, _tpc=tpc: (c * _tpc + t, 0)
        if use_real:
            operands.append(_pack_rows(pred_real, rows_total))
            in_specs.append(pl.BlockSpec((tile_rows, LANES), idx))
        operands.append(_pack_rows(pred_fake, rows_total))
        in_specs.append(pl.BlockSpec((tile_rows, LANES), idx))
        operands = tuple(operands)

        kernel = _make_flat_kernel(metric, mode, smoothing, n_real=n_real,
                                   n_fake=n_fake, n_padded=n_padded,
                                   tile_rows=tile_rows, tiles_per_chunk=tpc,
                                   use_real=use_real)
        tile_bytes = len(operands) * tile_rows * LANES * jnp.dtype(pred_fake.dtype).itemsize

    out = pl.pallas_call(
        kernel,
        grid=(chunks, tpc),
        in_specs=in_specs,
        out_specs=pl.BlockSpec((1, SUBLANES, LANES), lambda c, t: (c, 0, 0)),
        out_shape=jax.ShapeDtypeStruct((chunks, SUBLANES, LANES), jnp.float32),
        compiler_params=pltpu.CompilerParams(
            dimension_semantics=("parallel", "arbitrary"),
            # inputs x 2 buffers x tile, plus headroom
            vmem_limit_bytes=int(max(4 * tile_bytes + (2 << 20), 8 << 20)),
        ),
    )(*operands)

    # Tiny final cross-lane/sublane reduce (<= chunks*8*128 floats).
    return jnp.sum(out)


class GANLoss:
    """JAX/Pallas port of the PyTorch GANLoss module."""

    def __init__(self, metric: str, smoothing: float = 1.0):
        # buffers of the PyTorch module (kept for parity; folded into the kernel)
        self.label_real = jnp.float32(1.0)
        self.label_fake = jnp.float32(0.0)
        self.metric = metric
        self.smoothing = float(smoothing)

    def __call__(self, pred_real, pred_fake, mode):
        if mode not in ("G", "D"):
            raise ValueError(mode)
        return gan_loss(pred_real, pred_fake, mode=mode,
                        metric=self.metric, smoothing=self.smoothing)


# ----------------------- pure-JAX reference (for checking) -----------------------
def _ref_loss(pred_real, pred_fake, mode, metric, smoothing):
    pr = pred_real.astype(jnp.float32)
    pf = pred_fake.astype(jnp.float32)
    sp = jax.nn.softplus
    relu = jax.nn.relu
    ad = lambda t1, t2: t1 - jnp.mean(t2, axis=0, keepdims=True)
    if mode == "D":
        if metric == "nsgan":
            return jnp.mean(sp(-pr)) + jnp.mean(sp(pf))
        if metric == "wgan":
            return -jnp.mean(pr) + jnp.mean(pf)
        if metric == "lsgan":
            return jnp.mean((pr - smoothing) ** 2) + jnp.mean(pf ** 2)
        if metric == "hinge":
            return jnp.mean(relu(1.0 - pr)) + jnp.mean(relu(1.0 + pf))
        if metric == "ragan":
            return jnp.mean(sp(-ad(pr, pf))) + jnp.mean(sp(ad(pf, pr)))
        if metric == "rahinge":
            return jnp.mean(relu(1.0 - ad(pr, pf))) + jnp.mean(relu(1.0 + ad(pf, pr)))
        if metric == "ralsgan":
            return jnp.mean((ad(pr, pf) - 1.0) ** 2) + jnp.mean((ad(pf, pr) + 1.0) ** 2)
    else:
        if metric == "nsgan":
            return jnp.mean(sp(-pf))
        if metric == "wgan":
            return -jnp.mean(pf)
        if metric == "lsgan":
            return jnp.mean((pf - 1.0) ** 2)
        if metric == "hinge":
            return -jnp.mean(pf)
        if metric == "ragan":
            return jnp.mean(sp(ad(pr, pf))) + jnp.mean(sp(-ad(pf, pr)))
        if metric == "rahinge":
            return jnp.mean(relu(1.0 + ad(pr, pf))) + jnp.mean(relu(1.0 - ad(pf, pr)))
        if metric == "ralsgan":
            return jnp.mean((ad(pr, pf) + 1.0) ** 2) + jnp.mean((ad(pf, pr) - 1.0) ** 2)
    raise NotImplementedError


if __name__ == "__main__":
    key = jax.random.PRNGKey(0)
    kr, kf, kr2, kf2 = jax.random.split(key, 4)
    # discriminator outputs, NCHW
    pred_real = jax.random.normal(kr, (2, 4, 16, 16), dtype=jnp.float32)
    pred_fake = jax.random.normal(kf, (2, 4, 16, 16), dtype=jnp.float32)
    # ragged shape: exercises the in-kernel padded-tail masks
    pred_real_r = jax.random.normal(kr2, (2, 3, 7, 9), dtype=jnp.float32)
    pred_fake_r = jax.random.normal(kf2, (2, 3, 7, 9), dtype=jnp.float32)

    smoothing = 0.9
    ok = True
    for pr, pf in ((pred_real, pred_fake), (pred_real_r, pred_fake_r)):
        for metric in METRICS:
            crit = GANLoss(metric, smoothing=smoothing)
            for mode in ("D", "G"):
                got = jax.block_until_ready(crit(pr, pf, mode))
                want = _ref_loss(pr, pf, mode, metric, smoothing)
                if not jnp.allclose(got, want, rtol=1e-5, atol=1e-5):
                    ok = False
                    print(f"MISMATCH shape={tuple(pr.shape)} metric={metric} "
                          f"mode={mode}: {got} vs {want}")

    if ok:
        print("KERNEL_OK")
</pallas_src>

<mosaic_0001>
module attributes {stable_mosaic.version = 11 : i64} {
  func.func @kernel(%arg0: i32, %arg1: i32, %arg2: memref<16x128xf32, #tpu.memory_space<vmem>>, %arg3: memref<16x128xf32, #tpu.memory_space<vmem>>, %arg4: memref<1x8x128xf32, #tpu.memory_space<vmem>>) attributes {dimension_semantics = [#tpu.dimension_semantics<parallel>, #tpu.dimension_semantics<arbitrary>], iteration_bounds = array<i64: 1, 1>, scalar_prefetch = 0 : i64, scratch_operands = 0 : i64, tpu.core_type = #tpu.core_type<tc>, window_params = [{transform_indices = @transform_0, window_bounds = array<i64: 16, 128>}, {transform_indices = @transform_1, window_bounds = array<i64: 16, 128>}, {transform_indices = @transform_2, window_bounds = array<i64: 1, 8, 128>}]} {
    %c0_i32 = arith.constant 0 : i32
    %0 = arith.cmpi eq, %arg1, %c0_i32 : i32
    %1 = arith.extui %0 : i1 to i32
    %c0_i32_0 = arith.constant 0 : i32
    %2 = arith.cmpi ne, %1, %c0_i32_0 : i32
    scf.if %2 {
      %cst_18 = arith.constant 0.000000e+00 : f32
      %36 = vector.broadcast %cst_18 : f32 to vector<1x8x128xf32>
      %c0_19 = arith.constant 0 : index
      %c0_20 = arith.constant 0 : index
      %c0_21 = arith.constant 0 : index
      %37 = vector.load %arg4[%c0_19, %c0_20, %c0_21] : memref<1x8x128xf32, #tpu.memory_space<vmem>>, vector<1x8x128xf32>
      tpu.vector_store %arg4[%c0_19, %c0_20, %c0_21], %36 {strides = array<i32>} : memref<1x8x128xf32, #tpu.memory_space<vmem>>, vector<1x8x128xf32>,
    } else {
    }
    %c0 = arith.constant 0 : index
    %c0_1 = arith.constant 0 : index
    %3 = vector.load %arg3[%c0, %c0_1] : memref<16x128xf32, #tpu.memory_space<vmem>>, vector<16x128xf32>
    %cst = arith.constant 0.000000e+00 : f32
    %4 = vector.broadcast %cst : f32 to vector<16x128xf32>
    %5 = arith.maximumf %3, %4 : vector<16x128xf32>
    %6 = math.absf %3 : vector<16x128xf32>
    %cst_2 = arith.constant 0.000000e+00 : f32
    %7 = vector.broadcast %cst_2 : f32 to vector<16x128xf32>
    %8 = arith.subf %7, %6 : vector<16x128xf32>
    %9 = math.exp %8 : vector<16x128xf32>
    %10 = math.log1p %9 : vector<16x128xf32>
    %11 = arith.addf %5, %10 : vector<16x128xf32>
    %12 = vector.shape_cast %11 : vector<16x128xf32> to vector<2x8x128xf32>
    %cst_3 = arith.constant dense<0.000000e+00> : vector<8x128xf32>
    %13 = vector.multi_reduction <add>, %12, %cst_3 [0] : vector<2x8x128xf32> to vector<8x128xf32>
    %cst_4 = arith.constant 4.8828125E-4 : f32
    %14 = vector.broadcast %cst_4 : f32 to vector<8x128xf32>
    %15 = arith.mulf %13, %14 : vector<8x128xf32>
    %c0_5 = arith.constant 0 : index
    %c0_6 = arith.constant 0 : index
    %16 = vector.load %arg2[%c0_5, %c0_6] : memref<16x128xf32, #tpu.memory_space<vmem>>, vector<16x128xf32>
    %cst_7 = arith.constant 0.000000e+00 : f32
    %17 = vector.broadcast %cst_7 : f32 to vector<16x128xf32>
    %18 = arith.subf %17, %16 : vector<16x128xf32>
    %cst_8 = arith.constant 0.000000e+00 : f32
    %19 = vector.broadcast %cst_8 : f32 to vector<16x128xf32>
    %20 = arith.maximumf %18, %19 : vector<16x128xf32>
    %21 = math.absf %18 : vector<16x128xf32>
    %cst_9 = arith.constant 0.000000e+00 : f32
    %22 = vector.broadcast %cst_9 : f32 to vector<16x128xf32>
    %23 = arith.subf %22, %21 : vector<16x128xf32>
    %24 = math.exp %23 : vector<16x128xf32>
    %25 = math.log1p %24 : vector<16x128xf32>
    %26 = arith.addf %20, %25 : vector<16x128xf32>
    %27 = vector.shape_cast %26 : vector<16x128xf32> to vector<2x8x128xf32>
    %cst_10 = arith.constant dense<0.000000e+00> : vector<8x128xf32>
    %28 = vector.multi_reduction <add>, %27, %cst_10 [0] : vector<2x8x128xf32> to vector<8x128xf32>
    %cst_11 = arith.constant 4.8828125E-4 : f32
    %29 = vector.broadcast %cst_11 : f32 to vector<8x128xf32>
    %30 = arith.mulf %28, %29 : vector<8x128xf32>
    %31 = arith.addf %15, %30 : vector<8x128xf32>
    %c0_12 = arith.constant 0 : index
    %c0_13 = arith.constant 0 : index
    %c0_14 = arith.constant 0 : index
    %32 = vector.load %arg4[%c0_12, %c0_13, %c0_14] : memref<1x8x128xf32, #tpu.memory_space<vmem>>, vector<1x8x128xf32>
    %33 = vector.shape_cast %31 : vector<8x128xf32> to vector<1x8x128xf32>
    %34 = arith.addf %32, %33 : vector<1x8x128xf32>
    %c0_15 = arith.constant 0 : index
    %c0_16 = arith.constant 0 : index
    %c0_17 = arith.constant 0 : index
    %35 = vector.load %arg4[%c0_15, %c0_16, %c0_17] : memref<1x8x128xf32, #tpu.memory_space<vmem>>, vector<1x8x128xf32>
    tpu.vector_store %arg4[%c0_15, %c0_16, %c0_17], %34 {strides = array<i32>} : memref<1x8x128xf32, #tpu.memory_space<vmem>>, vector<1x8x128xf32>,
    return
  }
  func.func @transform_0(%arg0: i32, %arg1: i32) -> (i32, i32) {
    %c1_i32 = arith.constant 1 : i32
    %0 = arith.muli %arg0, %c1_i32 : i32
    %1 = arith.addi %0, %arg1 : i32
    %c0_i32 = arith.constant 0 : i32
    %c0_i32_0 = arith.constant 0 : i32
    return %1, %c0_i32 : i32, i32
  }
  func.func @transform_1(%arg0: i32, %arg1: i32) -> (i32, i32) {
    %c1_i32 = arith.constant 1 : i32
    %0 = arith.muli %arg0, %c1_i32 : i32
    %1 = arith.addi %0, %arg1 : i32
    %c0_i32 = arith.constant 0 : i32
    %c0_i32_0 = arith.constant 0 : i32
    return %1, %c0_i32 : i32, i32
  }
  func.func @transform_2(%arg0: i32, %arg1: i32) -> (i32, i32, i32) {
    %c0_i32 = arith.constant 0 : i32
    %c0_i32_0 = arith.constant 0 : i32
    %c0_i32_1 = arith.constant 0 : i32
    return %arg0, %c0_i32, %c0_i32_0 : i32, i32, i32
  }
}

</mosaic_0001>

<llo_original>
// kernel: gan_loss.1
$region0: #{gan_loss.1}
  #allocation0 [shape = 'u32[]', space=smem, size = 0x4, offset = 0x4, fixed_abs, tag = 'smem constant byte address 0x4 - core index']
  #allocation1 [shape = 'u32[144,128]{1,0:T(1,128)}', space=vmem, size = 0x12000, scoped, tag = 'internal scratch']
  %s0 = inlined_call_operand.vmem [shape: f32[16,128], index: 0, kind: input, shape index: {}]
  %s1 = inlined_call_operand.vmem [shape: f32[16,128], index: 1, kind: input, shape index: {}]
  %s2 = inlined_call_operand.vmem [shape: f32[1,8,128], index: 2, kind: output, shape index: {}]
  %s3 = sld [smem:[#allocation0]]
  $region22: #{gan_loss.1} parent=0
    _
  %s5 = ssub.s32 1, %s3
  %s6 = scalar_select 0, %s5, %s3
  // Predicated region
  $region2: #{gan_loss.1} parent=0 // pred_check
    _
  $region3: #{gan_loss.1} parent=0 // pred_check_branch
    %8 = sbr.rel (0) target = $region5
  $region4: #{gan_loss.1} parent=0 // pred_region
    %s9 = sadd.s32 0, 0
    %s10 = smul.u32 2, %s9
    %p11 = scmp.lt.s32.totalorder %s10, 1
    %s12 = scalar_select %p11, %s10, 1
    %s13 = smul.addr %s12, 8
    %s14 = scalar_lea.vmem %s0, %s13
    %s15 = sadd.s32 0, 0
    %s16 = smul.u32 2, %s15
  $region5: #{gan_loss.1} parent=0 // pred_fallthru
    _
  // Predicated region
  $region6: #{gan_loss.1} parent=0 // pred_check
    _
  $region7: #{gan_loss.1} parent=0 // pred_check_branch
    %18 = sbr.rel (0) target = $region9
  $region8: #{gan_loss.1} parent=0 // pred_region
    %s19 = sadd.s32 0, 0
    %s20 = smul.u32 2, %s19
    %p21 = scmp.lt.s32.totalorder %s20, 1
    %s22 = scalar_select %p21, %s20, 1
    %s23 = smul.addr %s22, 8
    %s24 = scalar_lea.vmem %s1, %s23
    %s25 = sadd.s32 0, 0
    %s26 = smul.u32 2, %s25
  $region9: #{gan_loss.1} parent=0 // pred_fallthru
    _
  %s27 = sadd.s32 0, 0
  %s28 = smul.u32 2, %s27
  %p29 = scmp.lt.s32.totalorder %s28, 1
  %s30 = scalar_select %p29, %s28, 1
  %s31 = smul.addr %s30, 8
  %s32 = scalar_lea.vmem %s0, %s31
  %s33 = sadd.s32 0, 0
  %s34 = smul.u32 2, %s33
  %p35 = scmp.lt.s32.totalorder %s34, 1
  %s36 = scalar_select %p35, %s34, 1
  %s37 = smul.addr %s36, 8
  %s38 = scalar_lea.vmem %s1, %s37
  %s39 = sadd.s32 0, 0
  %s40 = smul.u32 2, %s39
  %p41 = scmp.lt.s32.totalorder %s40, 1
  %s42 = scalar_select %p41, %s40, 1
  %s43 = smul.addr %s42, 8
  %s44 = scalar_lea.vmem %s0, %s43
  %s45 = sadd.s32 0, 0
  %s46 = smul.u32 2, %s45
  %s47 = sadd.s32 0, 0
  %s48 = smul.u32 2, %s47
  %p49 = scmp.lt.s32.totalorder %s48, 1
  %s50 = scalar_select %p49, %s48, 1
  %s51 = smul.addr %s50, 8
  %s52 = scalar_lea.vmem %s1, %s51
  %s53 = sadd.s32 0, 0
  %s54 = smul.u32 2, %s53
  %p55 = scmp.eq.s32.totalorder 0, 0
  // Predicated region
  $region10: #{gan_loss.1} parent=0 // pred_check
    %p56 = pneg %p55
  $region11: #{gan_loss.1} parent=0 // pred_check_branch
    %58 = sbr.rel (%p56) target = $region13
  $region12: #{gan_loss.1} parent=0 // pred_region
    %59 = vst [vmem:[%s2] sm:$0xff] 0.0
  $region13: #{gan_loss.1} parent=0 // pred_fallthru
    _
  %v60 = vld [vmem:[%s52] sm:$0xff]
  %v61 = vld [vmem:[%s52 + $0x8] sm:$0xff]
  %v62 = vmax.f32 %v60, 0.0
  %v63 = vmax.f32 %v61, 0.0
  %v64 = vand.u32 2147483647, %v60
  %v65 = vand.u32 2147483647, %v61
  %v66 = vsub.f32 0.0, %v64
  %v67 = vsub.f32 0.0, %v65
  %v68 = vmul.f32 %v66, 1.442695
  %v69 = vpow.pop %v68
  %v70 = vmul.f32 %v67, 1.442695
  %v71 = vpow.pop %v70
  %v72 = vadd.f32 %v69, 1.0
  %v73 = vlog2.pop %v72
  %v74 = vmul.f32 %v73, 0.6931472
  %v75 = vmul.f32 -0.5, %v69
  %v76 = vadd.f32 %v75, 1.0
  %v77 = vmul.f32 %v76, %v69
  %v78 = vand.u32 2147483647, %v69
  %vm79 = vcmp.lt.f32.partialorder %v78, 0.0004427343
  %v80 = vsel %vm79, %v77, %v74
  %v81 = vadd.f32 %v71, 1.0
  %v82 = vlog2.pop %v81
  %v83 = vmul.f32 %v82, 0.6931472
  %v84 = vmul.f32 -0.5, %v71
  %v85 = vadd.f32 %v84, 1.0
  %v86 = vmul.f32 %v85, %v71
  %v87 = vand.u32 2147483647, %v71
  %vm88 = vcmp.lt.f32.partialorder %v87, 0.0004427343
  %v89 = vsel %vm88, %v86, %v83
  %v90 = vadd.f32 %v62, %v80
  %v91 = vadd.f32 %v63, %v89
  %v92 = vadd.f32 %v90, %v91
  %v93 = vmul.f32 %v92, 0.00048828125
  %v94 = vld [vmem:[%s44] sm:$0xff]
  %v95 = vld [vmem:[%s44 + $0x8] sm:$0xff]
  %v96 = vsub.f32 0.0, %v94
  %v97 = vsub.f32 0.0, %v95
  %v98 = vmax.f32 %v96, 0.0
  %v99 = vmax.f32 %v97, 0.0
  %v100 = vand.u32 2147483647, %v96
  %v101 = vand.u32 2147483647, %v97
  %v102 = vsub.f32 0.0, %v100
  %v103 = vsub.f32 0.0, %v101
  %v104 = vmul.f32 %v102, 1.442695
  %v105 = vpow.pop %v104
  %v106 = vmul.f32 %v103, 1.442695
  %v107 = vpow.pop %v106
  %v108 = vadd.f32 %v105, 1.0
  %v109 = vlog2.pop %v108
  %v110 = vmul.f32 %v109, 0.6931472
  %v111 = vmul.f32 -0.5, %v105
  %v112 = vadd.f32 %v111, 1.0
  %v113 = vmul.f32 %v112, %v105
  %v114 = vand.u32 2147483647, %v105
  %vm115 = vcmp.lt.f32.partialorder %v114, 0.0004427343
  %v116 = vsel %vm115, %v113, %v110
  %v117 = vadd.f32 %v107, 1.0
  %v118 = vlog2.pop %v117
  %v119 = vmul.f32 %v118, 0.6931472
  %v120 = vmul.f32 -0.5, %v107
  %v121 = vadd.f32 %v120, 1.0
  %v122 = vmul.f32 %v121, %v107
  %v123 = vand.u32 2147483647, %v107
  %vm124 = vcmp.lt.f32.partialorder %v123, 0.0004427343
  %v125 = vsel %vm124, %v122, %v119
  %v126 = vadd.f32 %v98, %v116
  %v127 = vadd.f32 %v99, %v125
  %v128 = vadd.f32 %v126, %v127
  %v129 = vmul.f32 %v128, 0.00048828125
  %v130 = vadd.f32 %v93, %v129
  %v131 = vld [vmem:[%s2] sm:$0xff]
  %v132 = vadd.f32 %v131, %v130
  %133 = vst [vmem:[%s2] sm:$0xff] %v132
  // Predicated region
  $region14: #{gan_loss.1} parent=0 // pred_check
    _
  $region15: #{gan_loss.1} parent=0 // pred_check_branch
    %135 = sbr.rel (0) target = $region17
  $region16: #{gan_loss.1} parent=0 // pred_region
    _
  $region17: #{gan_loss.1} parent=0 // pred_fallthru
    _
  // Predicated region
  $region18: #{gan_loss.1} parent=0 // pred_check
    _
  $region19: #{gan_loss.1} parent=0 // pred_check_branch
    %137 = sbr.rel (0) target = $region21
  $region20: #{gan_loss.1} parent=0 // pred_region
    _
  $region21: #{gan_loss.1} parent=0 // pred_fallthru
    _

</llo_original>
